<compile_context>
chip_gen: v6e
topology: v6e:2x2x1
jax: 0.10.0
libtpu: 0.0.40
codegen_flags: <defaults>
</compile_context>

<pallas_src>
import functools

import jax
import jax.numpy as jnp
from jax.experimental import pallas as pl
from jax.experimental.pallas import tpu as pltpu


def _round_up(x, m):
    return ((x + m - 1) // m) * m


def _cdiv(a, b):
    return (a + b - 1) // b


def _cls_head_kernel(labels_ref, z_ref, w_ref, b_ref,      # inputs
                     pred_ref, loss_ref,                    # outputs
                     m_ref, l_ref, picked_ref,              # scratch (tm, 1)
                     *, num_classes, tn):
    # Grid: (i over B tiles) parallel, (j over C tiles) arbitrary (carries the
    # online-logsumexp state in scratch).
    j = pl.program_id(1)
    nj = pl.num_programs(1)

    # ---- single full-K matmul on the MXU; W stays in (C, D) layout ----
    logits = jax.lax.dot_general(
        z_ref[...], w_ref[...],
        dimension_numbers=(((1,), (1,)), ((), ())),   # z @ W^T
        preferred_element_type=jnp.float32,
    ) + b_ref[...]                                     # (tm, tn) f32
    pred_ref[...] = logits                             # lane-dense 128-mult store

    # Grid-invariant local column iota; global column = j*tn + local_col.
    local_col = jax.lax.broadcasted_iota(jnp.int32, logits.shape, 1)
    col0 = j * tn

    # Neutralize padded class columns (global col >= num_classes) in-kernel.
    NEG = jnp.float32(-1e30)
    masked = jnp.where(local_col < (num_classes - col0), logits, NEG)

    # ---- online logsumexp over C tiles (all f32 VPU/EUP math) ----
    @pl.when(j == 0)
    def _():
        m_ref[...] = jnp.full_like(m_ref, -jnp.inf)
        l_ref[...] = jnp.zeros_like(l_ref)
        picked_ref[...] = jnp.zeros_like(picked_ref)

    m_old = m_ref[...]
    m_new = jnp.maximum(m_old, jnp.max(masked, axis=-1, keepdims=True))
    l_ref[...] = (l_ref[...] * jnp.exp(m_old - m_new)
                  + jnp.sum(jnp.exp(masked - m_new), axis=-1, keepdims=True))
    m_ref[...] = m_new

    # Fused picked-label-logit extraction for this C tile (labels < C always).
    labels = labels_ref[...]                            # (tm, 1) int32
    picked_ref[...] += jnp.sum(
        jnp.where(local_col == (labels - col0), logits, 0.0),
        axis=-1, keepdims=True)

    # ---- finalize per-row loss on the last C tile ----
    @pl.when(j == nj - 1)
    def _():
        loss_ref[...] = m_ref[...] + jnp.log(l_ref[...]) - picked_ref[...]


@functools.partial(jax.jit, static_argnames=("compute_dtype",))
def cls_head_forward(z, weight, bias, labels, *, compute_dtype=jnp.bfloat16):
    """ClsHead forward.

    z:       (B, D) float
    weight:  (C, D) float   (nn.Linear layout; NOT transposed by the wrapper)
    bias:    (C,)   float
    labels:  (B,)   int
    compute_dtype: MXU input dtype (default bf16; accumulation and all softmax
                   math stay f32).  Pass jnp.float32 for exact logits.
    Returns dict(pred=(B, C) f32 logits, loss=() f32 mean cross-entropy).
    """
    B, D = z.shape
    C = weight.shape[0]

    in_dtype = z.dtype if compute_dtype is None else jnp.dtype(compute_dtype)
    in_size = jnp.dtype(in_dtype).itemsize
    if in_dtype != z.dtype:
        z = z.astype(in_dtype)
    if in_dtype != weight.dtype:
        weight = weight.astype(in_dtype)

    # ---- tile selection (VMEM-budget driven, k axis collapsed) ----
    Dp = _round_up(D, 128)
    B8 = _round_up(B, 8)

    tm = min(256, B8)
    # Prefer >=2 batch blocks so the 'parallel' axis can shard across v7x's
    # two TensorCores.
    if B8 >= 16 and B8 // tm < 2:
        tm = max(8, _round_up(_cdiv(B8, 2), 8))

    tn = min(2048, _round_up(C, 128))

    def _ws_bytes(tm_, tn_):
        per = (tm_ * Dp * in_size       # z block
               + tn_ * Dp * in_size     # weight block
               + 8 * tn_ * 4            # bias block (sublane-padded)
               + tm_ * 4                # labels block
               + tm_ * tn_ * 4          # pred block (f32)
               + tm_ * 4)               # loss block
        return 2 * per                  # double buffering

    _BUDGET = 24 << 20                  # safe inside v7x's 64 MiB VMEM per TC
    while tn > 128 and _ws_bytes(tm, tn) > _BUDGET:
        tn = _round_up(tn // 2, 128)    # shrink tn before tm (v7x guidance)
    while tm > 8 and _ws_bytes(tm, tn) > _BUDGET:
        tm = max(8, _round_up(tm // 2, 8))

    Bp = _round_up(B, tm)
    Cp = _round_up(C, tn)

    # ---- zero-pad to tile multiples (no-ops when already aligned) ----
    z_p = z if (Bp == B and Dp == D) else jnp.pad(z, ((0, Bp - B), (0, Dp - D)))
    w_p = weight if (Cp == C and Dp == D) else jnp.pad(
        weight, ((0, Cp - C), (0, Dp - D)))
    b_p = bias.astype(jnp.float32).reshape(1, C)
    if Cp != C:
        b_p = jnp.pad(b_p, ((0, 0), (0, Cp - C)))        # padded cols masked in-kernel
    lab_p = labels.astype(jnp.int32).reshape(B, 1)
    if Bp != B:
        lab_p = jnp.pad(lab_p, ((0, Bp - B), (0, 0)))

    ni, nj = Bp // tm, Cp // tn
    grid = (ni, nj)

    vmem_limit = max(32 << 20,
                     min(48 << 20, int(1.5 * _ws_bytes(tm, tn)) + (2 << 20)))

    cost = pl.CostEstimate(
        flops=2 * Bp * Cp * Dp,
        transcendentals=Bp * Cp,                         # exp per logit
        bytes_accessed=(Bp * Dp * in_size * nj           # z re-read per C tile
                        + Cp * Dp * in_size * ni         # W re-read per B tile
                        + Bp * Cp * 4                    # pred write
                        + Cp * 4 + Bp * 8),              # bias, labels, loss
    )

    kernel = functools.partial(_cls_head_kernel, num_classes=C, tn=tn)

    pred_p, loss_rows = pl.pallas_call(
        kernel,
        out_shape=(
            jax.ShapeDtypeStruct((Bp, Cp), jnp.float32),   # logits
            jax.ShapeDtypeStruct((Bp, 1), jnp.float32),    # per-row loss
        ),
        grid=grid,
        in_specs=[
            pl.BlockSpec((tm, 1), lambda i, j: (i, 0)),    # labels
            pl.BlockSpec((tm, Dp), lambda i, j: (i, 0)),   # z (full K)
            pl.BlockSpec((tn, Dp), lambda i, j: (j, 0)),   # W, (C, D) layout
            pl.BlockSpec((1, tn), lambda i, j: (0, j)),    # bias
        ],
        out_specs=(
            pl.BlockSpec((tm, tn), lambda i, j: (i, j)),   # pred tile
            pl.BlockSpec((tm, 1), lambda i, j: (i, 0)),    # loss rows
        ),
        scratch_shapes=[
            pltpu.VMEM((tm, 1), jnp.float32),   # running max m
            pltpu.VMEM((tm, 1), jnp.float32),   # running sum-exp l
            pltpu.VMEM((tm, 1), jnp.float32),   # picked label logit
        ],
        compiler_params=pltpu.CompilerParams(
            # Batch axis parallel (shards across v7x's 2 TCs); C carries the
            # online-logsumexp state in scratch -> arbitrary.
            dimension_semantics=("parallel", "arbitrary"),
            vmem_limit_bytes=vmem_limit,
        ),
        cost_estimate=cost,
    )(lab_p, z_p, w_p, b_p)

    pred = pred_p[:B, :C]
    loss = jnp.mean(loss_rows[:B, 0])   # mean over the *true* batch size
    return dict(pred=pred, loss=loss)


def _reference(z, weight, bias, labels):
    logits = z @ weight.T + bias
    lse = jax.scipy.special.logsumexp(logits, axis=-1)
    picked = jnp.take_along_axis(logits, labels[:, None], axis=-1)[:, 0]
    return logits, jnp.mean(lse - picked)


if __name__ == "__main__":
    # Small shapes consistent with the module: batch=8, input_dim=32, classes=16.
    B, D, C = 8, 32, 16

    key = jax.random.PRNGKey(0)
    k_z, k_w, k_lab = jax.random.split(key, 3)

    z = jax.random.normal(k_z, (B, D), dtype=jnp.float32)
    # nn.Linear weight is (C, D); init normal(0, 0.01); bias zeroed.
    weight = 0.01 * jax.random.normal(k_w, (C, D), dtype=jnp.float32)
    bias = jnp.zeros((C,), dtype=jnp.float32)
    labels = jax.random.randint(k_lab, (B,), 0, C, dtype=jnp.int32)

    ref_logits, ref_loss = _reference(z, weight, bias, labels)

    # Default path: bf16 MXU inputs, f32 accumulation / softmax math.
    out_bf16 = cls_head_forward(z, weight, bias, labels)
    jax.block_until_ready(out_bf16)
    assert jnp.allclose(out_bf16["pred"], ref_logits, atol=1e-2, rtol=1e-2)
    assert jnp.allclose(out_bf16["loss"], ref_loss, atol=1e-2, rtol=1e-2)

    # Exact f32 path (tight check against the pure-JAX reference).
    out_f32 = cls_head_forward(z, weight, bias, labels,
                               compute_dtype=jnp.float32)
    jax.block_until_ready(out_f32)
    assert jnp.allclose(out_f32["pred"], ref_logits, atol=1e-5, rtol=1e-5)
    assert jnp.allclose(out_f32["loss"], ref_loss, atol=1e-5, rtol=1e-5)

    print("KERNEL_OK")
</pallas_src>

<mosaic_0001>
module attributes {stable_mosaic.version = 11 : i64} {
  func.func @_cls_head_kernel(%arg0: i32, %arg1: i32, %arg2: memref<8x1xi32, #tpu.memory_space<vmem>>, %arg3: memref<8x128xbf16, #tpu.memory_space<vmem>>, %arg4: memref<128x128xbf16, #tpu.memory_space<vmem>>, %arg5: memref<1x128xf32, #tpu.memory_space<vmem>>, %arg6: memref<8x128xf32, #tpu.memory_space<vmem>>, %arg7: memref<8x1xf32, #tpu.memory_space<vmem>>, %arg8: memref<8x1xf32, #tpu.memory_space<vmem>>, %arg9: memref<8x1xf32, #tpu.memory_space<vmem>>, %arg10: memref<8x1xf32, #tpu.memory_space<vmem>>) attributes {dimension_semantics = [#tpu.dimension_semantics<parallel>, #tpu.dimension_semantics<arbitrary>], iteration_bounds = array<i64: 1, 1>, scalar_prefetch = 0 : i64, scratch_operands = 3 : i64, tpu.core_type = #tpu.core_type<tc>, window_params = [{transform_indices = @transform_0, window_bounds = array<i64: 8, 1>}, {transform_indices = @transform_1, window_bounds = array<i64: 8, 128>}, {transform_indices = @transform_2, window_bounds = array<i64: 128, 128>}, {transform_indices = @transform_3, window_bounds = array<i64: 1, 128>}, {transform_indices = @transform_4, window_bounds = array<i64: 8, 128>}, {transform_indices = @transform_5, window_bounds = array<i64: 8, 1>}]} {
    %c0 = arith.constant 0 : index
    %c0_0 = arith.constant 0 : index
    %0 = vector.load %arg3[%c0, %c0_0] : memref<8x128xbf16, #tpu.memory_space<vmem>>, vector<8x128xbf16>
    %c0_1 = arith.constant 0 : index
    %c0_2 = arith.constant 0 : index
    %1 = vector.load %arg4[%c0_1, %c0_2] : memref<128x128xbf16, #tpu.memory_space<vmem>>, vector<128x128xbf16>
    %cst = arith.constant dense<0.000000e+00> : vector<8x128xf32>
    %2 = tpu.matmul %0, %1, %cst {dimension_numbers = #tpu.dot_dimension_numbers<[1], [1], [0], [0], [0, 0, 1, 0], [], []>} : vector<8x128xbf16>, vector<128x128xbf16>, vector<8x128xf32> -> vector<8x128xf32>
    %c0_3 = arith.constant 0 : index
    %c0_4 = arith.constant 0 : index
    %3 = vector.load %arg5[%c0_3, %c0_4] : memref<1x128xf32, #tpu.memory_space<vmem>>, vector<1x128xf32>
    %4 = vector.broadcast %3 : vector<1x128xf32> to vector<8x128xf32>
    %5 = arith.addf %2, %4 : vector<8x128xf32>
    %c0_5 = arith.constant 0 : index
    %c0_6 = arith.constant 0 : index
    %6 = vector.load %arg6[%c0_5, %c0_6] : memref<8x128xf32, #tpu.memory_space<vmem>>, vector<8x128xf32>
    tpu.vector_store %arg6[%c0_5, %c0_6], %5 {strides = array<i32>} : memref<8x128xf32, #tpu.memory_space<vmem>>, vector<8x128xf32>,
    %7 = tpu.iota {dimensions = array<i32: 1>} : vector<8x128xi32>
    %c128_i32 = arith.constant 128 : i32
    %8 = arith.muli %arg1, %c128_i32 : i32
    %c16_i32 = arith.constant 16 : i32
    %9 = arith.subi %c16_i32, %8 : i32
    %10 = vector.broadcast %9 : i32 to vector<8x128xi32>
    %11 = arith.cmpi slt, %7, %10 : vector<8x128xi32>
    %cst_7 = arith.constant -1.000000e+30 : f32
    %12 = vector.broadcast %cst_7 : f32 to vector<8x128xf32>
    %13 = arith.select %11, %5, %12 : vector<8x128xi1>, vector<8x128xf32>
    %c0_i32 = arith.constant 0 : i32
    %14 = arith.cmpi eq, %arg1, %c0_i32 : i32
    %15 = arith.extui %14 : i1 to i32
    %c0_i32_8 = arith.constant 0 : i32
    %16 = arith.cmpi ne, %15, %c0_i32_8 : i32
    scf.if %16 {
      %cst_29 = arith.constant 0xFF800000 : f32
      %48 = vector.broadcast %cst_29 : f32 to vector<8x1xf32>
      %c0_30 = arith.constant 0 : index
      %c0_31 = arith.constant 0 : index
      %49 = vector.load %arg8[%c0_30, %c0_31] : memref<8x1xf32, #tpu.memory_space<vmem>>, vector<8x1xf32>
      tpu.vector_store %arg8[%c0_30, %c0_31], %48 {strides = array<i32>} : memref<8x1xf32, #tpu.memory_space<vmem>>, vector<8x1xf32>,
      %cst_32 = arith.constant 0.000000e+00 : f32
      %50 = vector.broadcast %cst_32 : f32 to vector<8x1xf32>
      %c0_33 = arith.constant 0 : index
      %c0_34 = arith.constant 0 : index
      %51 = vector.load %arg9[%c0_33, %c0_34] : memref<8x1xf32, #tpu.memory_space<vmem>>, vector<8x1xf32>
      tpu.vector_store %arg9[%c0_33, %c0_34], %50 {strides = array<i32>} : memref<8x1xf32, #tpu.memory_space<vmem>>, vector<8x1xf32>,
      %cst_35 = arith.constant 0.000000e+00 : f32
      %52 = vector.broadcast %cst_35 : f32 to vector<8x1xf32>
      %c0_36 = arith.constant 0 : index
      %c0_37 = arith.constant 0 : index
      %53 = vector.load %arg10[%c0_36, %c0_37] : memref<8x1xf32, #tpu.memory_space<vmem>>, vector<8x1xf32>
      tpu.vector_store %arg10[%c0_36, %c0_37], %52 {strides = array<i32>} : memref<8x1xf32, #tpu.memory_space<vmem>>, vector<8x1xf32>,
    } else {
    }
    %c0_9 = arith.constant 0 : index
    %c0_10 = arith.constant 0 : index
    %17 = vector.load %arg8[%c0_9, %c0_10] : memref<8x1xf32, #tpu.memory_space<vmem>>, vector<8x1xf32>
    %cst_11 = arith.constant dense<0xFF800000> : vector<8xf32>
    %18 = vector.multi_reduction <maximumf>, %13, %cst_11 [1] : vector<8x128xf32> to vector<8xf32>
    %19 = vector.shape_cast %18 : vector<8xf32> to vector<8x1xf32>
    %20 = arith.maximumf %17, %19 : vector<8x1xf32>
    %c0_12 = arith.constant 0 : index
    %c0_13 = arith.constant 0 : index
    %21 = vector.load %arg9[%c0_12, %c0_13] : memref<8x1xf32, #tpu.memory_space<vmem>>, vector<8x1xf32>
    %22 = arith.subf %17, %20 : vector<8x1xf32>
    %23 = math.exp %22 : vector<8x1xf32>
    %24 = arith.mulf %21, %23 : vector<8x1xf32>
    %25 = vector.broadcast %20 : vector<8x1xf32> to vector<8x128xf32>
    %26 = arith.subf %13, %25 : vector<8x128xf32>
    %27 = math.exp %26 : vector<8x128xf32>
    %cst_14 = arith.constant dense<0.000000e+00> : vector<8xf32>
    %28 = vector.multi_reduction <add>, %27, %cst_14 [1] : vector<8x128xf32> to vector<8xf32>
    %29 = vector.shape_cast %28 : vector<8xf32> to vector<8x1xf32>
    %30 = arith.addf %24, %29 : vector<8x1xf32>
    %c0_15 = arith.constant 0 : index
    %c0_16 = arith.constant 0 : index
    %31 = vector.load %arg9[%c0_15, %c0_16] : memref<8x1xf32, #tpu.memory_space<vmem>>, vector<8x1xf32>
    tpu.vector_store %arg9[%c0_15, %c0_16], %30 {strides = array<i32>} : memref<8x1xf32, #tpu.memory_space<vmem>>, vector<8x1xf32>,
    %c0_17 = arith.constant 0 : index
    %c0_18 = arith.constant 0 : index
    %32 = vector.load %arg8[%c0_17, %c0_18] : memref<8x1xf32, #tpu.memory_space<vmem>>, vector<8x1xf32>
    tpu.vector_store %arg8[%c0_17, %c0_18], %20 {strides = array<i32>} : memref<8x1xf32, #tpu.memory_space<vmem>>, vector<8x1xf32>,
    %c0_19 = arith.constant 0 : index
    %c0_20 = arith.constant 0 : index
    %33 = vector.load %arg2[%c0_19, %c0_20] : memref<8x1xi32, #tpu.memory_space<vmem>>, vector<8x1xi32>
    %c0_21 = arith.constant 0 : index
    %c0_22 = arith.constant 0 : index
    %34 = vector.load %arg10[%c0_21, %c0_22] : memref<8x1xf32, #tpu.memory_space<vmem>>, vector<8x1xf32>
    %35 = vector.broadcast %8 : i32 to vector<8x1xi32>
    %36 = arith.subi %33, %35 : vector<8x1xi32>
    %37 = vector.broadcast %36 : vector<8x1xi32> to vector<8x128xi32>
    %38 = arith.cmpi eq, %7, %37 : vector<8x128xi32>
    %cst_23 = arith.constant 0.000000e+00 : f32
    %39 = vector.broadcast %cst_23 : f32 to vector<8x128xf32>
    %40 = arith.select %38, %5, %39 : vector<8x128xi1>, vector<8x128xf32>
    %cst_24 = arith.constant dense<0.000000e+00> : vector<8xf32>
    %41 = vector.multi_reduction <add>, %40, %cst_24 [1] : vector<8x128xf32> to vector<8xf32>
    %42 = vector.shape_cast %41 : vector<8xf32> to vector<8x1xf32>
    %43 = arith.addf %34, %42 : vector<8x1xf32>
    %c0_25 = arith.constant 0 : index
    %c0_26 = arith.constant 0 : index
    %44 = vector.load %arg10[%c0_25, %c0_26] : memref<8x1xf32, #tpu.memory_space<vmem>>, vector<8x1xf32>
    tpu.vector_store %arg10[%c0_25, %c0_26], %43 {strides = array<i32>} : memref<8x1xf32, #tpu.memory_space<vmem>>, vector<8x1xf32>,
    %c0_i32_27 = arith.constant 0 : i32
    %45 = arith.cmpi eq, %arg1, %c0_i32_27 : i32
    %46 = arith.extui %45 : i1 to i32
    %c0_i32_28 = arith.constant 0 : i32
    %47 = arith.cmpi ne, %46, %c0_i32_28 : i32
    scf.if %47 {
      %c0_29 = arith.constant 0 : index
      %c0_30 = arith.constant 0 : index
      %48 = vector.load %arg8[%c0_29, %c0_30] : memref<8x1xf32, #tpu.memory_space<vmem>>, vector<8x1xf32>
      %c0_31 = arith.constant 0 : index
      %c0_32 = arith.constant 0 : index
      %49 = vector.load %arg9[%c0_31, %c0_32] : memref<8x1xf32, #tpu.memory_space<vmem>>, vector<8x1xf32>
      %50 = math.log %49 : vector<8x1xf32>
      %51 = arith.addf %48, %50 : vector<8x1xf32>
      %c0_33 = arith.constant 0 : index
      %c0_34 = arith.constant 0 : index
      %52 = vector.load %arg10[%c0_33, %c0_34] : memref<8x1xf32, #tpu.memory_space<vmem>>, vector<8x1xf32>
      %53 = arith.subf %51, %52 : vector<8x1xf32>
      %c0_35 = arith.constant 0 : index
      %c0_36 = arith.constant 0 : index
      %54 = vector.load %arg7[%c0_35, %c0_36] : memref<8x1xf32, #tpu.memory_space<vmem>>, vector<8x1xf32>
      tpu.vector_store %arg7[%c0_35, %c0_36], %53 {strides = array<i32>} : memref<8x1xf32, #tpu.memory_space<vmem>>, vector<8x1xf32>,
    } else {
    }
    return
  }
  func.func @transform_0(%arg0: i32, %arg1: i32) -> (i32, i32) {
    %c0_i32 = arith.constant 0 : i32
    %c0_i32_0 = arith.constant 0 : i32
    return %arg0, %c0_i32 : i32, i32
  }
  func.func @transform_1(%arg0: i32, %arg1: i32) -> (i32, i32) {
    %c0_i32 = arith.constant 0 : i32
    %c0_i32_0 = arith.constant 0 : i32
    return %arg0, %c0_i32 : i32, i32
  }
  func.func @transform_2(%arg0: i32, %arg1: i32) -> (i32, i32) {
    %c0_i32 = arith.constant 0 : i32
    %c0_i32_0 = arith.constant 0 : i32
    return %arg1, %c0_i32 : i32, i32
  }
  func.func @transform_3(%arg0: i32, %arg1: i32) -> (i32, i32) {
    %c0_i32 = arith.constant 0 : i32
    %c0_i32_0 = arith.constant 0 : i32
    return %c0_i32, %arg1 : i32, i32
  }
  func.func @transform_4(%arg0: i32, %arg1: i32) -> (i32, i32) {
    %c0_i32 = arith.constant 0 : i32
    return %arg0, %arg1 : i32, i32
  }
  func.func @transform_5(%arg0: i32, %arg1: i32) -> (i32, i32) {
    %c0_i32 = arith.constant 0 : i32
    %c0_i32_0 = arith.constant 0 : i32
    return %arg0, %c0_i32 : i32, i32
  }
}

</mosaic_0001>

<llo_original>
// kernel: cls_head_forward.1
$region0: #{cls_head_forward.1}
  #allocation0 [shape = 'u32[]', space=smem, size = 0x4, offset = 0x4, fixed_abs, tag = 'smem constant byte address 0x4 - core index']
  #allocation1 [shape = 'u32[144,128]{1,0:T(1,128)}', space=vmem, size = 0x12000, scoped, tag = 'internal scratch']
  #allocation2 [shape = 'f32[8,1]{1,0:T(8,128)}', space=vmem, size = 0x1000, scoped, tag = 'scratch operand']
  #allocation3 [shape = 'f32[8,1]{1,0:T(8,128)}', space=vmem, size = 0x1000, scoped, tag = 'scratch operand']
  #allocation4 [shape = 'f32[8,1]{1,0:T(8,128)}', space=vmem, size = 0x1000, scoped, tag = 'scratch operand']
  %s0 = inlined_call_operand.vmem [shape: s32[8,1], index: 0, kind: input, shape index: {}]
  %s1 = inlined_call_operand.vmem [shape: bf16[8,128], index: 1, kind: input, shape index: {}]
  %s2 = inlined_call_operand.vmem [shape: bf16[128,128], index: 2, kind: input, shape index: {}]
  %s3 = inlined_call_operand.vmem [shape: f32[1,128], index: 3, kind: input, shape index: {}]
  %s4 = inlined_call_operand.hbm [shape: f32[8,128], index: 4, kind: output, shape index: {0}]
  %s5 = inlined_call_operand.vmem [shape: f32[8,1], index: 5, kind: output, shape index: {1}]
  %6 = xla_tuple %s4, %s5
  %s7 = sld [smem:[#allocation0]]
  $region42: #{cls_head_forward.1} parent=0
    _
  %s9 = ssub.s32 1, %s7
  %s10 = scalar_select 0, %s9, %s7
  $region1: #{cls_head_forward.1} parent=0
    #allocation5 [shape = 'u8[4096]{0}', space=vmem, size = 0x1000, scoped, tag = 'output window, operand 0, single buffered']
    #allocation6 [shape = 's32[1]{0}', space=sflag, size = 0x4, scoped, tag = 'scoped memory for cls_head_forward.1']
    %11 = vsyncpa [#allocation6], 0
    // Predicated region
    $region2: #{cls_head_forward.1} parent=1 // pred_check
      _
    $region3: #{cls_head_forward.1} parent=1 // pred_check_branch
      %13 = sbr.rel (0) target = $region5
    $region4: #{cls_head_forward.1} parent=1 // pred_region
      _
    $region5: #{cls_head_forward.1} parent=1 // pred_fallthru
      _
    // Predicated region
    $region6: #{cls_head_forward.1} parent=1 // pred_check
      _
    $region7: #{cls_head_forward.1} parent=1 // pred_check_branch
      %15 = sbr.rel (0) target = $region9
    $region8: #{cls_head_forward.1} parent=1 // pred_region
      _
    $region9: #{cls_head_forward.1} parent=1 // pred_fallthru
      _
    // Predicated region
    $region10: #{cls_head_forward.1} parent=1 // pred_check
      _
    $region11: #{cls_head_forward.1} parent=1 // pred_check_branch
      %17 = sbr.rel (0) target = $region13
    $region12: #{cls_head_forward.1} parent=1 // pred_region
      _
    $region13: #{cls_head_forward.1} parent=1 // pred_fallthru
      _
    // Predicated region
    $region14: #{cls_head_forward.1} parent=1 // pred_check
      _
    $region15: #{cls_head_forward.1} parent=1 // pred_check_branch
      %19 = sbr.rel (0) target = $region17
    $region16: #{cls_head_forward.1} parent=1 // pred_region
      _
    $region17: #{cls_head_forward.1} parent=1 // pred_fallthru
      _
    %v21 = vld [vmem:[%s1] sm:$0xf]
    %v22 = vld [vmem:[%s2] sm:$0xf]
    %v23 = vld [vmem:[%s2 + $0x4] sm:$0xf]
    %v24 = vld [vmem:[%s2 + $0x8] sm:$0xf]
    %v25 = vld [vmem:[%s2 + $0xc] sm:$0xf]
    %v26 = vld [vmem:[%s2 + $0x10] sm:$0xf]
    %v27 = vld [vmem:[%s2 + $0x14] sm:$0xf]
    %v28 = vld [vmem:[%s2 + $0x18] sm:$0xf]
    %v29 = vld [vmem:[%s2 + $0x1c] sm:$0xf]
    %v30 = vld [vmem:[%s2 + $0x20] sm:$0xf]
    %v31 = vld [vmem:[%s2 + $0x24] sm:$0xf]
    %v32 = vld [vmem:[%s2 + $0x28] sm:$0xf]
    %v33 = vld [vmem:[%s2 + $0x2c] sm:$0xf]
    %v34 = vld [vmem:[%s2 + $0x30] sm:$0xf]
    %v35 = vld [vmem:[%s2 + $0x34] sm:$0xf]
    %v36 = vld [vmem:[%s2 + $0x38] sm:$0xf]
    %v37 = vld [vmem:[%s2 + $0x3c] sm:$0xf]
    %v38 = vld [vmem:[%s3] sm:$0x1]
    %v40 = vlaneseq
    %v41 = vshrl.u32 %v40, 7
    %v42 = vsub.s32 0, %v41
    %v43 = vrot.slane %v38, %v42
    %v61 = vunpack.c.l.b16 %v22
    %v62 = vunpack.c.l.b16 %v23
    %v63 = vunpack.c.l.b16 %v24
    %v64 = vunpack.c.l.b16 %v25
    %v65 = vunpack.c.l.b16 %v26
    %v66 = vunpack.c.l.b16 %v27
    %v67 = vunpack.c.l.b16 %v28
    %v68 = vunpack.c.l.b16 %v29
    %v69 = vunpack.c.l.b16 %v30
    %v70 = vunpack.c.l.b16 %v31
    %v71 = vunpack.c.l.b16 %v32
    %v72 = vunpack.c.l.b16 %v33
    %v73 = vunpack.c.l.b16 %v34
    %v74 = vunpack.c.l.b16 %v35
    %v75 = vunpack.c.l.b16 %v36
    %v76 = vunpack.c.l.b16 %v37
    %v77 = vpack.c.b16 %v62, %v61
    %v78 = vpack.c.b16 %v64, %v63
    %v79 = vpack.c.b16 %v66, %v65
    %v80 = vpack.c.b16 %v68, %v67
    %v81 = vpack.c.b16 %v70, %v69
    %v82 = vpack.c.b16 %v72, %v71
    %v83 = vpack.c.b16 %v74, %v73
    %v84 = vpack.c.b16 %v76, %v75
    %93 = vmatprep.subr.bf16.mxu0 0
    %94 = vmatpush1.bf16.xpose.msra.mxu0 %v84
    %95 = vmatprep.subr.bf16.mxu0 0
    %96 = vmatpush1.bf16.xpose.msra.mxu0 %v83
    %97 = vmatprep.subr.bf16.mxu0 0
    %98 = vmatpush1.bf16.xpose.msra.mxu0 %v82
    %99 = vmatprep.subr.bf16.mxu0 0
    %100 = vmatpush1.bf16.xpose.msra.mxu0 %v81
    %101 = vmatprep.subr.bf16.mxu0 0
    %102 = vmatpush1.bf16.xpose.msra.mxu0 %v80
    %103 = vmatprep.subr.bf16.mxu0 0
    %104 = vmatpush1.bf16.xpose.msra.mxu0 %v79
    %105 = vmatprep.subr.bf16.mxu0 0
    %106 = vmatpush1.bf16.xpose.msra.mxu0 %v78
    %107 = vmatprep.subr.bf16.mxu0 0
    %108 = vmatpush1.bf16.xpose.msra.mxu0 %v77
    %109 = vmatprep.subr.bf16.mxu0 0
    %110 = vmatpush2.bf16.xpose.msra.mxu0 0
    %111 = vmatprep.subr.bf16.mxu0 0
    %112 = vmatpush2.bf16.xpose.msra.mxu0 0
    %113 = vmatprep.subr.bf16.mxu0 0
    %114 = vmatpush2.bf16.xpose.msra.mxu0 0
    %115 = vmatprep.subr.bf16.mxu0 0
    %116 = vmatpush2.bf16.xpose.msra.mxu0 0
    %117 = vmatprep.subr.bf16.mxu0 0
    %118 = vmatpush2.bf16.xpose.msra.mxu0 0
    %119 = vmatprep.subr.bf16.mxu0 0
    %120 = vmatpush2.bf16.xpose.msra.mxu0 0
    %121 = vmatprep.subr.bf16.mxu0 0
    %122 = vmatpush2.bf16.xpose.msra.mxu0 0
    %123 = vmatprep.subr.bf16.mxu0 0
    %124 = vmatpush2.bf16.xpose.msra.mxu0 0
    %125 = vmatprep.mubr.bf16.mxu0 0
    %126 = vmatmul.mubr.bf16.gmra.mxu0 %v21
    %v127 = vpop.f32.mrf.mxu0
    %v128 = vadd.f32 %v43, %v127
    %v129 = vpop.f32.mrf.mxu0
    %v130 = vpop.f32.mrf.mxu0
    %v131 = vpop.f32.mrf.mxu0
    %132 = vdwg.mxu0
    %133 = vst [vmem:[#allocation5] sm:$0xff] %v128
    %v134 = vlaneseq
    %v135 = vand.u32 %v134, 127
    %s136 = smul.u32 0, 128
    %s137 = ssub.s32 16, %s136
    %v138 = vstv %s137
    %vm139 = vcmp.lt.s32.totalorder %v135, %v138
    %v140 = vsel %vm139, %v128, -1e+30
    %p141 = scmp.eq.s32.totalorder 0, 0
    // Predicated region
    $region18: #{cls_head_forward.1} parent=1 // pred_check
      %p142 = pneg %p141
    $region19: #{cls_head_forward.1} parent=1 // pred_check_branch
      %144 = sbr.rel (%p142) target = $region21
    $region20: #{cls_head_forward.1} parent=1 // pred_region
      %vm145 = vcmask 7168
      %146 = vst.msk [vmem:[#allocation2] sm:$0xff] %vm145, -inf
      %147 = vst.msk [vmem:[#allocation3] sm:$0xff] %vm145, 0.0
      %148 = vst.msk [vmem:[#allocation4] sm:$0xff] %vm145, 0.0
    $region21: #{cls_head_forward.1} parent=1 // pred_fallthru
      _
    %v149 = vld [vmem:[#allocation2] sm:$0xff]
    %150 = vmax.xlane.f32.xlu0 %v140
    %v151 = vpop.xlane.xlu0 %150
    %v152 = vmax.f32 %v149, %v151
    %v153 = vld [vmem:[#allocation3] sm:$0xff]
    %v154 = vsub.f32 %v149, %v152
    %v155 = vmul.f32 %v154, 1.442695
    %v156 = vpow.pop %v155
    %v157 = vmul.f32 %v153, %v156
    %159 = vset.pattern.permute.xlu0 0
    %160 = vperm.xlu0 %159, %v152
    %v161 = vpop.permute.xlu0 %160
    %v163 = vsub.f32 %v140, %v161
    %v164 = vmul.f32 %v163, 1.442695
    %v165 = vpow.pop %v164
    %166 = vadd.xlane.f32.xlu0 %v165
    %v167 = vpop.xlane.xlu0 %166
    %v168 = vadd.f32 %v157, %v167
    %vm169 = vcmask 7168
    %170 = vst.msk [vmem:[#allocation3] sm:$0xff] %vm169, %v168
    %171 = vst.msk [vmem:[#allocation2] sm:$0xff] %vm169, %v152
    %v172 = vld [vmem:[%s0] sm:$0xff]
    %v173 = vld [vmem:[#allocation4] sm:$0xff]
    %v174 = vstv %s136
    %v175 = vsub.s32 %v172, %v174
    %176 = vset.pattern.permute.xlu0 0
    %177 = vperm.xlu0 %176, %v175
    %v178 = vpop.permute.xlu0 %177
    %vm179 = vcmp.eq.s32.totalorder %v135, %v178
    %v180 = vsel %vm179, %v128, 0.0
    %181 = vadd.xlane.f32.xlu0 %v180
    %v182 = vpop.xlane.xlu0 %181
    %v183 = vadd.f32 %v173, %v182
    %184 = vst.msk [vmem:[#allocation4] sm:$0xff] %vm169, %v183
    // Predicated region
    $region22: #{cls_head_forward.1} parent=1 // pred_check
      %p185 = pneg %p141
    $region23: #{cls_head_forward.1} parent=1 // pred_check_branch
      %187 = sbr.rel (%p185) target = $region25
    $region24: #{cls_head_forward.1} parent=1 // pred_region
      %v188 = vld [vmem:[#allocation2] sm:$0xff]
      %v189 = vld [vmem:[#allocation3] sm:$0xff]
      %v190 = vlog2.pop %v189
      %v191 = vmul.f32 %v190, 0.6931472
      %v192 = vadd.f32 %v188, %v191
      %v193 = vld [vmem:[#allocation4] sm:$0xff]
      %v194 = vsub.f32 %v192, %v193
      %195 = vst.msk [vmem:[%s5] sm:$0xff] %vm169, %v194
    $region25: #{cls_head_forward.1} parent=1 // pred_fallthru
      _
    // Predicated region
    $region26: #{cls_head_forward.1} parent=1 // pred_check
      _
    $region27: #{cls_head_forward.1} parent=1 // pred_check_branch
      %197 = sbr.rel (0) target = $region29
    $region28: #{cls_head_forward.1} parent=1 // pred_region
      %s199 = ssub.s32 128, 128
      %200 = vsyncadd [#allocation6], %s199
      %s202 = sshll.u32 [#allocation5], 4
      %s203 = int_to_ptr.vmem [resolvable:$true] %s202
      %205 = dma.vmem_to_hbm [thread:$0]  %s203, 128, %s4, [#allocation6]
    $region29: #{cls_head_forward.1} parent=1 // pred_fallthru
      _
    // Predicated region
    $region30: #{cls_head_forward.1} parent=1 // pred_check
      _
    $region31: #{cls_head_forward.1} parent=1 // pred_check_branch
      %207 = sbr.rel (0) target = $region33
    $region32: #{cls_head_forward.1} parent=1 // pred_region
      _
    $region33: #{cls_head_forward.1} parent=1 // pred_fallthru
      _
    // Predicated region
    $region34: #{cls_head_forward.1} parent=1 // pred_check
      _
    $region35: #{cls_head_forward.1} parent=1 // pred_check_branch
      %209 = sbr.rel (0) target = $region37
    $region36: #{cls_head_forward.1} parent=1 // pred_region
      %210 = dma.done [#allocation6], 128
    $region37: #{cls_head_forward.1} parent=1 // pred_fallthru
      _
    // Predicated region
    $region38: #{cls_head_forward.1} parent=1 // pred_check
      _
    $region39: #{cls_head_forward.1} parent=1 // pred_check_branch
      %212 = sbr.rel (0) target = $region41
    $region40: #{cls_head_forward.1} parent=1 // pred_region
      _
    $region41: #{cls_head_forward.1} parent=1 // pred_fallthru
      _
    %213 = vsyncpa [#allocation6], 1

</llo_original>
